<compile_context>
chip_gen: v7x
topology: tpu7x:2x2x1
jax: 0.10.0
libtpu: 0.0.40
codegen_flags: <defaults>
</compile_context>

<pallas_src>
import jax
import jax.numpy as jnp
from jax import lax
from jax.experimental import pallas as pl
from jax.experimental.pallas import tpu as pltpu


def _round_up(x: int, m: int) -> int:
    return (x + m - 1) // m * m


def _gather_rows(idx_ref, emb_hbm, buf, sems, tile_tokens):
    """Issue one row-DMA per token of this tile (HBM table -> VMEM buf), then wait for all."""
    base = pl.program_id(0) * tile_tokens
    # Issue all row copies first so they overlap, then wait.
    for r in range(tile_tokens):
        row = idx_ref[base + r]
        pltpu.make_async_copy(
            emb_hbm.at[pl.ds(row, 1), :],
            buf.at[pl.ds(r, 1), :],
            sems.at[r],
        ).start()
    for r in range(tile_tokens):
        pltpu.make_async_copy(
            emb_hbm.at[pl.ds(0, 1), :],      # same-shaped descriptor just to wait on sems[r]
            buf.at[pl.ds(r, 1), :],
            sems.at[r],
        ).wait()


def _gather_project_kernel(idx_ref, emb_hbm, proj_ref, out_ref, buf, sems):
    # idx_ref : SMEM int32 [N_pad]           (scalar prefetch)
    # emb_hbm : HBM  f32   [num, dim_pad]    (memory_space=pl.ANY; gathered by DMA)
    # proj_ref: VMEM f32   [proj_pad, dim_pad] (resident across the grid)
    # out_ref : VMEM f32   [TN, proj_pad]
    # buf     : VMEM f32   [TN, dim_pad]     (gather scratch)
    tn = out_ref.shape[0]
    _gather_rows(idx_ref, emb_hbm, buf, sems, tn)
    gathered = buf[...]                                         # [TN, dim_pad]
    out = lax.dot_general(                                      # gathered @ W.T on the MXU
        gathered,
        proj_ref[...],
        dimension_numbers=(((1,), (1,)), ((), ())),
        preferred_element_type=jnp.float32,
    )                                                           # [TN, proj_pad]
    out_ref[...] = out.astype(out_ref.dtype)


def _gather_only_kernel(idx_ref, emb_hbm, out_ref, buf, sems):
    tn = out_ref.shape[0]
    _gather_rows(idx_ref, emb_hbm, buf, sems, tn)
    out_ref[...] = buf[...].astype(out_ref.dtype)


def embedding_layer_forward(indexes, emb_table, proj_weight=None, token_tile=64):
    """indexes: int [B, S]; emb_table: [num, dim]; proj_weight: [proj_dim, dim] or None.

    token_tile: tokens gathered per grid step (rounded up to a multiple of 8).
    """
    B, S = indexes.shape
    N = B * S
    num, dim = emb_table.shape
    dtype = emb_table.dtype

    # Token tile: multiple of 8 (sublane), no larger than the token count (rounded up).
    tn = max(8, _round_up(min(int(token_tile), N), 8))
    n_pad = _round_up(N, tn)
    dim_pad = _round_up(dim, 128)          # lane-dense gather rows / kernel output

    idx = indexes.reshape(-1).astype(jnp.int32)
    # PyTorch nn.Embedding raises on out-of-range indices; clamp to keep the DMA in bounds.
    # TODO(synk): surface an error for OOB indices instead of clamping if strict parity is needed.
    idx = jnp.clip(idx, 0, num - 1)
    if n_pad != N:
        idx = jnp.pad(idx, (0, n_pad - N))  # padded tail gathers row 0; sliced off below

    emb_p = emb_table
    if dim_pad != dim:
        emb_p = jnp.pad(emb_table, ((0, 0), (0, dim_pad - dim)))

    grid = (n_pad // tn,)
    cparams = pltpu.CompilerParams(dimension_semantics=("parallel",))

    if proj_weight is not None:
        proj_dim = proj_weight.shape[0]
        proj_pad = _round_up(proj_dim, 128)
        proj_p = proj_weight
        if proj_pad != proj_dim or dim_pad != dim:
            proj_p = jnp.pad(proj_weight, ((0, proj_pad - proj_dim), (0, dim_pad - dim)))

        out = pl.pallas_call(
            _gather_project_kernel,
            out_shape=jax.ShapeDtypeStruct((n_pad, proj_pad), dtype),
            grid_spec=pltpu.PrefetchScalarGridSpec(
                num_scalar_prefetch=1,
                grid=grid,
                in_specs=[
                    pl.BlockSpec(memory_space=pl.ANY),                          # table in HBM
                    pl.BlockSpec((proj_pad, dim_pad), lambda t, idx_s: (0, 0)),  # W resident
                ],
                out_specs=pl.BlockSpec((tn, proj_pad), lambda t, idx_s: (t, 0)),
                scratch_shapes=[
                    pltpu.VMEM((tn, dim_pad), dtype),
                    pltpu.SemaphoreType.DMA((tn,)),
                ],
            ),
            compiler_params=cparams,
        )(idx, emb_p, proj_p)
        return out[:N, :proj_dim].reshape(B, S, proj_dim)

    out = pl.pallas_call(
        _gather_only_kernel,
        out_shape=jax.ShapeDtypeStruct((n_pad, dim_pad), dtype),
        grid_spec=pltpu.PrefetchScalarGridSpec(
            num_scalar_prefetch=1,
            grid=grid,
            in_specs=[pl.BlockSpec(memory_space=pl.ANY)],
            out_specs=pl.BlockSpec((tn, dim_pad), lambda t, idx_s: (t, 0)),
            scratch_shapes=[
                pltpu.VMEM((tn, dim_pad), dtype),
                pltpu.SemaphoreType.DMA((tn,)),
            ],
        ),
        compiler_params=cparams,
    )(idx, emb_p)
    return out[:N, :dim].reshape(B, S, dim)


if __name__ == "__main__":
    # Module hyperparameters (small, consistent with the forward semantics).
    num, dim, proj_dim = 64, 32, 32
    B, S = 2, 8

    key = jax.random.PRNGKey(0)
    k_idx, k_emb, k_proj = jax.random.split(key, 3)

    # Deterministic "xavier-normal"-style parameter init (synthetic, not a checkpoint).
    emb_init = 0.1
    emb_std = emb_init * (2.0 / (num + dim)) ** 0.5
    emb_table = emb_std * jax.random.normal(k_emb, (num, dim), dtype=jnp.float32)

    gain = 2.0 ** 0.5  # relu gain
    proj_std = gain * (2.0 / (dim + proj_dim)) ** 0.5
    proj_weight = proj_std * jax.random.normal(k_proj, (proj_dim, dim), dtype=jnp.float32)

    indexes = jax.random.randint(k_idx, (B, S), 0, num, dtype=jnp.int32)

    # Projection path (token_tile=8 -> grid of 2 tiles at this toy size).
    out = embedding_layer_forward(indexes, emb_table, proj_weight, token_tile=8)
    out = jax.block_until_ready(out)
    ref = jnp.take(emb_table, indexes, axis=0) @ proj_weight.T
    assert out.shape == (B, S, proj_dim), out.shape
    assert jnp.allclose(out, ref, atol=1e-5, rtol=1e-5), "projection path mismatch vs reference"

    # Embedding-only path (projection = Identity).
    out_e = embedding_layer_forward(indexes, emb_table, None, token_tile=8)
    out_e = jax.block_until_ready(out_e)
    ref_e = jnp.take(emb_table, indexes, axis=0)
    assert out_e.shape == (B, S, dim), out_e.shape
    assert jnp.allclose(out_e, ref_e, atol=1e-6, rtol=1e-6), "embed-only path mismatch vs reference"

    print("KERNEL_OK")
</pallas_src>

<mosaic_0001>
module attributes {stable_mosaic.version = 11 : i64} {
  func.func @_gather_project_kernel(%arg0: i32, %arg1: memref<16xi32, #tpu.memory_space<smem>>, %arg2: memref<64x128xf32, #tpu.memory_space<any>>, %arg3: memref<128x128xf32, #tpu.memory_space<vmem>>, %arg4: memref<8x128xf32, #tpu.memory_space<vmem>>, %arg5: memref<8x128xf32, #tpu.memory_space<vmem>>, %arg6: memref<8x!tpu.dma_semaphore, #tpu.memory_space<semaphore_mem>>) attributes {dimension_semantics = [#tpu.dimension_semantics<parallel>], iteration_bounds = array<i64: 2>, scalar_prefetch = 1 : i64, scratch_operands = 2 : i64, tpu.core_type = #tpu.core_type<tc>, window_params = [{}, {pipeline_mode = #tpu.pipeline_mode<synchronous>, transform_indices = @transform_1, window_bounds = array<i64: 128, 128>}, {transform_indices = @transform_2, window_bounds = array<i64: 8, 128>}]} {
    %c8_i32 = arith.constant 8 : i32
    %0 = arith.muli %arg0, %c8_i32 : i32
    %c0_i32 = arith.constant 0 : i32
    %1 = arith.addi %0, %c0_i32 : i32
    %2 = arith.index_cast %1 : i32 to index
    %3 = memref.load %arg1[%2] : memref<16xi32, #tpu.memory_space<smem>>
    %c0_i32_0 = arith.constant 0 : i32
    %c0_i32_1 = arith.constant 0 : i32
    %4 = tpu.memref_slice %arg2[%3, %c0_i32_1] : memref<64x128xf32, #tpu.memory_space<any>> -> memref<1x128xf32, #tpu.memory_space<any>>
    %c0_i32_2 = arith.constant 0 : i32
    %c0_i32_3 = arith.constant 0 : i32
    %5 = tpu.memref_slice %arg5[%c0_i32_2, %c0_i32_3] : memref<8x128xf32, #tpu.memory_space<vmem>> -> memref<1x128xf32, #tpu.memory_space<vmem>>
    %6 = tpu.memref_slice %arg6[%c0_i32_0] : memref<8x!tpu.dma_semaphore, #tpu.memory_space<semaphore_mem>> -> memref<1x!tpu.dma_semaphore, #tpu.memory_space<semaphore_mem>>
    %7 = tpu.memref_squeeze %6 : memref<1x!tpu.dma_semaphore, #tpu.memory_space<semaphore_mem>> -> memref<!tpu.dma_semaphore, #tpu.memory_space<semaphore_mem>>
    tpu.enqueue_dma source(%4 : memref<1x128xf32, #tpu.memory_space<any>>) target(%5 : memref<1x128xf32, #tpu.memory_space<vmem>>) target_semaphore(%7 : memref<!tpu.dma_semaphore, #tpu.memory_space<semaphore_mem>>)
    %c1_i32 = arith.constant 1 : i32
    %8 = arith.addi %0, %c1_i32 : i32
    %9 = arith.index_cast %8 : i32 to index
    %10 = memref.load %arg1[%9] : memref<16xi32, #tpu.memory_space<smem>>
    %c1_i32_4 = arith.constant 1 : i32
    %c0_i32_5 = arith.constant 0 : i32
    %11 = tpu.memref_slice %arg2[%10, %c0_i32_5] : memref<64x128xf32, #tpu.memory_space<any>> -> memref<1x128xf32, #tpu.memory_space<any>>
    %c1_i32_6 = arith.constant 1 : i32
    %c0_i32_7 = arith.constant 0 : i32
    %12 = tpu.memref_slice %arg5[%c1_i32_6, %c0_i32_7] : memref<8x128xf32, #tpu.memory_space<vmem>> -> memref<1x128xf32, #tpu.memory_space<vmem>>
    %13 = tpu.memref_slice %arg6[%c1_i32_4] : memref<8x!tpu.dma_semaphore, #tpu.memory_space<semaphore_mem>> -> memref<1x!tpu.dma_semaphore, #tpu.memory_space<semaphore_mem>>
    %14 = tpu.memref_squeeze %13 : memref<1x!tpu.dma_semaphore, #tpu.memory_space<semaphore_mem>> -> memref<!tpu.dma_semaphore, #tpu.memory_space<semaphore_mem>>
    tpu.enqueue_dma source(%11 : memref<1x128xf32, #tpu.memory_space<any>>) target(%12 : memref<1x128xf32, #tpu.memory_space<vmem>>) target_semaphore(%14 : memref<!tpu.dma_semaphore, #tpu.memory_space<semaphore_mem>>)
    %c2_i32 = arith.constant 2 : i32
    %15 = arith.addi %0, %c2_i32 : i32
    %16 = arith.index_cast %15 : i32 to index
    %17 = memref.load %arg1[%16] : memref<16xi32, #tpu.memory_space<smem>>
    %c2_i32_8 = arith.constant 2 : i32
    %c0_i32_9 = arith.constant 0 : i32
    %18 = tpu.memref_slice %arg2[%17, %c0_i32_9] : memref<64x128xf32, #tpu.memory_space<any>> -> memref<1x128xf32, #tpu.memory_space<any>>
    %c2_i32_10 = arith.constant 2 : i32
    %c0_i32_11 = arith.constant 0 : i32
    %19 = tpu.memref_slice %arg5[%c2_i32_10, %c0_i32_11] : memref<8x128xf32, #tpu.memory_space<vmem>> -> memref<1x128xf32, #tpu.memory_space<vmem>>
    %20 = tpu.memref_slice %arg6[%c2_i32_8] : memref<8x!tpu.dma_semaphore, #tpu.memory_space<semaphore_mem>> -> memref<1x!tpu.dma_semaphore, #tpu.memory_space<semaphore_mem>>
    %21 = tpu.memref_squeeze %20 : memref<1x!tpu.dma_semaphore, #tpu.memory_space<semaphore_mem>> -> memref<!tpu.dma_semaphore, #tpu.memory_space<semaphore_mem>>
    tpu.enqueue_dma source(%18 : memref<1x128xf32, #tpu.memory_space<any>>) target(%19 : memref<1x128xf32, #tpu.memory_space<vmem>>) target_semaphore(%21 : memref<!tpu.dma_semaphore, #tpu.memory_space<semaphore_mem>>)
    %c3_i32 = arith.constant 3 : i32
    %22 = arith.addi %0, %c3_i32 : i32
    %23 = arith.index_cast %22 : i32 to index
    %24 = memref.load %arg1[%23] : memref<16xi32, #tpu.memory_space<smem>>
    %c3_i32_12 = arith.constant 3 : i32
    %c0_i32_13 = arith.constant 0 : i32
    %25 = tpu.memref_slice %arg2[%24, %c0_i32_13] : memref<64x128xf32, #tpu.memory_space<any>> -> memref<1x128xf32, #tpu.memory_space<any>>
    %c3_i32_14 = arith.constant 3 : i32
    %c0_i32_15 = arith.constant 0 : i32
    %26 = tpu.memref_slice %arg5[%c3_i32_14, %c0_i32_15] : memref<8x128xf32, #tpu.memory_space<vmem>> -> memref<1x128xf32, #tpu.memory_space<vmem>>
    %27 = tpu.memref_slice %arg6[%c3_i32_12] : memref<8x!tpu.dma_semaphore, #tpu.memory_space<semaphore_mem>> -> memref<1x!tpu.dma_semaphore, #tpu.memory_space<semaphore_mem>>
    %28 = tpu.memref_squeeze %27 : memref<1x!tpu.dma_semaphore, #tpu.memory_space<semaphore_mem>> -> memref<!tpu.dma_semaphore, #tpu.memory_space<semaphore_mem>>
    tpu.enqueue_dma source(%25 : memref<1x128xf32, #tpu.memory_space<any>>) target(%26 : memref<1x128xf32, #tpu.memory_space<vmem>>) target_semaphore(%28 : memref<!tpu.dma_semaphore, #tpu.memory_space<semaphore_mem>>)
    %c4_i32 = arith.constant 4 : i32
    %29 = arith.addi %0, %c4_i32 : i32
    %30 = arith.index_cast %29 : i32 to index
    %31 = memref.load %arg1[%30] : memref<16xi32, #tpu.memory_space<smem>>
    %c4_i32_16 = arith.constant 4 : i32
    %c0_i32_17 = arith.constant 0 : i32
    %32 = tpu.memref_slice %arg2[%31, %c0_i32_17] : memref<64x128xf32, #tpu.memory_space<any>> -> memref<1x128xf32, #tpu.memory_space<any>>
    %c4_i32_18 = arith.constant 4 : i32
    %c0_i32_19 = arith.constant 0 : i32
    %33 = tpu.memref_slice %arg5[%c4_i32_18, %c0_i32_19] : memref<8x128xf32, #tpu.memory_space<vmem>> -> memref<1x128xf32, #tpu.memory_space<vmem>>
    %34 = tpu.memref_slice %arg6[%c4_i32_16] : memref<8x!tpu.dma_semaphore, #tpu.memory_space<semaphore_mem>> -> memref<1x!tpu.dma_semaphore, #tpu.memory_space<semaphore_mem>>
    %35 = tpu.memref_squeeze %34 : memref<1x!tpu.dma_semaphore, #tpu.memory_space<semaphore_mem>> -> memref<!tpu.dma_semaphore, #tpu.memory_space<semaphore_mem>>
    tpu.enqueue_dma source(%32 : memref<1x128xf32, #tpu.memory_space<any>>) target(%33 : memref<1x128xf32, #tpu.memory_space<vmem>>) target_semaphore(%35 : memref<!tpu.dma_semaphore, #tpu.memory_space<semaphore_mem>>)
    %c5_i32 = arith.constant 5 : i32
    %36 = arith.addi %0, %c5_i32 : i32
    %37 = arith.index_cast %36 : i32 to index
    %38 = memref.load %arg1[%37] : memref<16xi32, #tpu.memory_space<smem>>
    %c5_i32_20 = arith.constant 5 : i32
    %c0_i32_21 = arith.constant 0 : i32
    %39 = tpu.memref_slice %arg2[%38, %c0_i32_21] : memref<64x128xf32, #tpu.memory_space<any>> -> memref<1x128xf32, #tpu.memory_space<any>>
    %c5_i32_22 = arith.constant 5 : i32
    %c0_i32_23 = arith.constant 0 : i32
    %40 = tpu.memref_slice %arg5[%c5_i32_22, %c0_i32_23] : memref<8x128xf32, #tpu.memory_space<vmem>> -> memref<1x128xf32, #tpu.memory_space<vmem>>
    %41 = tpu.memref_slice %arg6[%c5_i32_20] : memref<8x!tpu.dma_semaphore, #tpu.memory_space<semaphore_mem>> -> memref<1x!tpu.dma_semaphore, #tpu.memory_space<semaphore_mem>>
    %42 = tpu.memref_squeeze %41 : memref<1x!tpu.dma_semaphore, #tpu.memory_space<semaphore_mem>> -> memref<!tpu.dma_semaphore, #tpu.memory_space<semaphore_mem>>
    tpu.enqueue_dma source(%39 : memref<1x128xf32, #tpu.memory_space<any>>) target(%40 : memref<1x128xf32, #tpu.memory_space<vmem>>) target_semaphore(%42 : memref<!tpu.dma_semaphore, #tpu.memory_space<semaphore_mem>>)
    %c6_i32 = arith.constant 6 : i32
    %43 = arith.addi %0, %c6_i32 : i32
    %44 = arith.index_cast %43 : i32 to index
    %45 = memref.load %arg1[%44] : memref<16xi32, #tpu.memory_space<smem>>
    %c6_i32_24 = arith.constant 6 : i32
    %c0_i32_25 = arith.constant 0 : i32
    %46 = tpu.memref_slice %arg2[%45, %c0_i32_25] : memref<64x128xf32, #tpu.memory_space<any>> -> memref<1x128xf32, #tpu.memory_space<any>>
    %c6_i32_26 = arith.constant 6 : i32
    %c0_i32_27 = arith.constant 0 : i32
    %47 = tpu.memref_slice %arg5[%c6_i32_26, %c0_i32_27] : memref<8x128xf32, #tpu.memory_space<vmem>> -> memref<1x128xf32, #tpu.memory_space<vmem>>
    %48 = tpu.memref_slice %arg6[%c6_i32_24] : memref<8x!tpu.dma_semaphore, #tpu.memory_space<semaphore_mem>> -> memref<1x!tpu.dma_semaphore, #tpu.memory_space<semaphore_mem>>
    %49 = tpu.memref_squeeze %48 : memref<1x!tpu.dma_semaphore, #tpu.memory_space<semaphore_mem>> -> memref<!tpu.dma_semaphore, #tpu.memory_space<semaphore_mem>>
    tpu.enqueue_dma source(%46 : memref<1x128xf32, #tpu.memory_space<any>>) target(%47 : memref<1x128xf32, #tpu.memory_space<vmem>>) target_semaphore(%49 : memref<!tpu.dma_semaphore, #tpu.memory_space<semaphore_mem>>)
    %c7_i32 = arith.constant 7 : i32
    %50 = arith.addi %0, %c7_i32 : i32
    %51 = arith.index_cast %50 : i32 to index
    %52 = memref.load %arg1[%51] : memref<16xi32, #tpu.memory_space<smem>>
    %c7_i32_28 = arith.constant 7 : i32
    %c0_i32_29 = arith.constant 0 : i32
    %53 = tpu.memref_slice %arg2[%52, %c0_i32_29] : memref<64x128xf32, #tpu.memory_space<any>> -> memref<1x128xf32, #tpu.memory_space<any>>
    %c7_i32_30 = arith.constant 7 : i32
    %c0_i32_31 = arith.constant 0 : i32
    %54 = tpu.memref_slice %arg5[%c7_i32_30, %c0_i32_31] : memref<8x128xf32, #tpu.memory_space<vmem>> -> memref<1x128xf32, #tpu.memory_space<vmem>>
    %55 = tpu.memref_slice %arg6[%c7_i32_28] : memref<8x!tpu.dma_semaphore, #tpu.memory_space<semaphore_mem>> -> memref<1x!tpu.dma_semaphore, #tpu.memory_space<semaphore_mem>>
    %56 = tpu.memref_squeeze %55 : memref<1x!tpu.dma_semaphore, #tpu.memory_space<semaphore_mem>> -> memref<!tpu.dma_semaphore, #tpu.memory_space<semaphore_mem>>
    tpu.enqueue_dma source(%53 : memref<1x128xf32, #tpu.memory_space<any>>) target(%54 : memref<1x128xf32, #tpu.memory_space<vmem>>) target_semaphore(%56 : memref<!tpu.dma_semaphore, #tpu.memory_space<semaphore_mem>>)
    %c0_i32_32 = arith.constant 0 : i32
    %c0_i32_33 = arith.constant 0 : i32
    %c0_i32_34 = arith.constant 0 : i32
    %57 = tpu.memref_slice %arg2[%c0_i32_33, %c0_i32_34] : memref<64x128xf32, #tpu.memory_space<any>> -> memref<1x128xf32, #tpu.memory_space<any>>
    %c0_i32_35 = arith.constant 0 : i32
    %c0_i32_36 = arith.constant 0 : i32
    %58 = tpu.memref_slice %arg5[%c0_i32_35, %c0_i32_36] : memref<8x128xf32, #tpu.memory_space<vmem>> -> memref<1x128xf32, #tpu.memory_space<vmem>>
    %59 = tpu.memref_slice %arg6[%c0_i32_32] : memref<8x!tpu.dma_semaphore, #tpu.memory_space<semaphore_mem>> -> memref<1x!tpu.dma_semaphore, #tpu.memory_space<semaphore_mem>>
    %60 = tpu.memref_squeeze %59 : memref<1x!tpu.dma_semaphore, #tpu.memory_space<semaphore_mem>> -> memref<!tpu.dma_semaphore, #tpu.memory_space<semaphore_mem>>
    tpu.wait_dma2 semaphore(%60 : memref<!tpu.dma_semaphore, #tpu.memory_space<semaphore_mem>>) src(%57 : memref<1x128xf32, #tpu.memory_space<any>>) dst(%58 : memref<1x128xf32, #tpu.memory_space<vmem>>)
    %c1_i32_37 = arith.constant 1 : i32
    %c0_i32_38 = arith.constant 0 : i32
    %c0_i32_39 = arith.constant 0 : i32
    %61 = tpu.memref_slice %arg2[%c0_i32_38, %c0_i32_39] : memref<64x128xf32, #tpu.memory_space<any>> -> memref<1x128xf32, #tpu.memory_space<any>>
    %c1_i32_40 = arith.constant 1 : i32
    %c0_i32_41 = arith.constant 0 : i32
    %62 = tpu.memref_slice %arg5[%c1_i32_40, %c0_i32_41] : memref<8x128xf32, #tpu.memory_space<vmem>> -> memref<1x128xf32, #tpu.memory_space<vmem>>
    %63 = tpu.memref_slice %arg6[%c1_i32_37] : memref<8x!tpu.dma_semaphore, #tpu.memory_space<semaphore_mem>> -> memref<1x!tpu.dma_semaphore, #tpu.memory_space<semaphore_mem>>
    %64 = tpu.memref_squeeze %63 : memref<1x!tpu.dma_semaphore, #tpu.memory_space<semaphore_mem>> -> memref<!tpu.dma_semaphore, #tpu.memory_space<semaphore_mem>>
    tpu.wait_dma2 semaphore(%64 : memref<!tpu.dma_semaphore, #tpu.memory_space<semaphore_mem>>) src(%61 : memref<1x128xf32, #tpu.memory_space<any>>) dst(%62 : memref<1x128xf32, #tpu.memory_space<vmem>>)
    %c2_i32_42 = arith.constant 2 : i32
    %c0_i32_43 = arith.constant 0 : i32
    %c0_i32_44 = arith.constant 0 : i32
    %65 = tpu.memref_slice %arg2[%c0_i32_43, %c0_i32_44] : memref<64x128xf32, #tpu.memory_space<any>> -> memref<1x128xf32, #tpu.memory_space<any>>
    %c2_i32_45 = arith.constant 2 : i32
    %c0_i32_46 = arith.constant 0 : i32
    %66 = tpu.memref_slice %arg5[%c2_i32_45, %c0_i32_46] : memref<8x128xf32, #tpu.memory_space<vmem>> -> memref<1x128xf32, #tpu.memory_space<vmem>>
    %67 = tpu.memref_slice %arg6[%c2_i32_42] : memref<8x!tpu.dma_semaphore, #tpu.memory_space<semaphore_mem>> -> memref<1x!tpu.dma_semaphore, #tpu.memory_space<semaphore_mem>>
    %68 = tpu.memref_squeeze %67 : memref<1x!tpu.dma_semaphore, #tpu.memory_space<semaphore_mem>> -> memref<!tpu.dma_semaphore, #tpu.memory_space<semaphore_mem>>
    tpu.wait_dma2 semaphore(%68 : memref<!tpu.dma_semaphore, #tpu.memory_space<semaphore_mem>>) src(%65 : memref<1x128xf32, #tpu.memory_space<any>>) dst(%66 : memref<1x128xf32, #tpu.memory_space<vmem>>)
    %c3_i32_47 = arith.constant 3 : i32
    %c0_i32_48 = arith.constant 0 : i32
    %c0_i32_49 = arith.constant 0 : i32
    %69 = tpu.memref_slice %arg2[%c0_i32_48, %c0_i32_49] : memref<64x128xf32, #tpu.memory_space<any>> -> memref<1x128xf32, #tpu.memory_space<any>>
    %c3_i32_50 = arith.constant 3 : i32
    %c0_i32_51 = arith.constant 0 : i32
    %70 = tpu.memref_slice %arg5[%c3_i32_50, %c0_i32_51] : memref<8x128xf32, #tpu.memory_space<vmem>> -> memref<1x128xf32, #tpu.memory_space<vmem>>
    %71 = tpu.memref_slice %arg6[%c3_i32_47] : memref<8x!tpu.dma_semaphore, #tpu.memory_space<semaphore_mem>> -> memref<1x!tpu.dma_semaphore, #tpu.memory_space<semaphore_mem>>
    %72 = tpu.memref_squeeze %71 : memref<1x!tpu.dma_semaphore, #tpu.memory_space<semaphore_mem>> -> memref<!tpu.dma_semaphore, #tpu.memory_space<semaphore_mem>>
    tpu.wait_dma2 semaphore(%72 : memref<!tpu.dma_semaphore, #tpu.memory_space<semaphore_mem>>) src(%69 : memref<1x128xf32, #tpu.memory_space<any>>) dst(%70 : memref<1x128xf32, #tpu.memory_space<vmem>>)
    %c4_i32_52 = arith.constant 4 : i32
    %c0_i32_53 = arith.constant 0 : i32
    %c0_i32_54 = arith.constant 0 : i32
    %73 = tpu.memref_slice %arg2[%c0_i32_53, %c0_i32_54] : memref<64x128xf32, #tpu.memory_space<any>> -> memref<1x128xf32, #tpu.memory_space<any>>
    %c4_i32_55 = arith.constant 4 : i32
    %c0_i32_56 = arith.constant 0 : i32
    %74 = tpu.memref_slice %arg5[%c4_i32_55, %c0_i32_56] : memref<8x128xf32, #tpu.memory_space<vmem>> -> memref<1x128xf32, #tpu.memory_space<vmem>>
    %75 = tpu.memref_slice %arg6[%c4_i32_52] : memref<8x!tpu.dma_semaphore, #tpu.memory_space<semaphore_mem>> -> memref<1x!tpu.dma_semaphore, #tpu.memory_space<semaphore_mem>>
    %76 = tpu.memref_squeeze %75 : memref<1x!tpu.dma_semaphore, #tpu.memory_space<semaphore_mem>> -> memref<!tpu.dma_semaphore, #tpu.memory_space<semaphore_mem>>
    tpu.wait_dma2 semaphore(%76 : memref<!tpu.dma_semaphore, #tpu.memory_space<semaphore_mem>>) src(%73 : memref<1x128xf32, #tpu.memory_space<any>>) dst(%74 : memref<1x128xf32, #tpu.memory_space<vmem>>)
    %c5_i32_57 = arith.constant 5 : i32
    %c0_i32_58 = arith.constant 0 : i32
    %c0_i32_59 = arith.constant 0 : i32
    %77 = tpu.memref_slice %arg2[%c0_i32_58, %c0_i32_59] : memref<64x128xf32, #tpu.memory_space<any>> -> memref<1x128xf32, #tpu.memory_space<any>>
    %c5_i32_60 = arith.constant 5 : i32
    %c0_i32_61 = arith.constant 0 : i32
    %78 = tpu.memref_slice %arg5[%c5_i32_60, %c0_i32_61] : memref<8x128xf32, #tpu.memory_space<vmem>> -> memref<1x128xf32, #tpu.memory_space<vmem>>
    %79 = tpu.memref_slice %arg6[%c5_i32_57] : memref<8x!tpu.dma_semaphore, #tpu.memory_space<semaphore_mem>> -> memref<1x!tpu.dma_semaphore, #tpu.memory_space<semaphore_mem>>
    %80 = tpu.memref_squeeze %79 : memref<1x!tpu.dma_semaphore, #tpu.memory_space<semaphore_mem>> -> memref<!tpu.dma_semaphore, #tpu.memory_space<semaphore_mem>>
    tpu.wait_dma2 semaphore(%80 : memref<!tpu.dma_semaphore, #tpu.memory_space<semaphore_mem>>) src(%77 : memref<1x128xf32, #tpu.memory_space<any>>) dst(%78 : memref<1x128xf32, #tpu.memory_space<vmem>>)
    %c6_i32_62 = arith.constant 6 : i32
    %c0_i32_63 = arith.constant 0 : i32
    %c0_i32_64 = arith.constant 0 : i32
    %81 = tpu.memref_slice %arg2[%c0_i32_63, %c0_i32_64] : memref<64x128xf32, #tpu.memory_space<any>> -> memref<1x128xf32, #tpu.memory_space<any>>
    %c6_i32_65 = arith.constant 6 : i32
    %c0_i32_66 = arith.constant 0 : i32
    %82 = tpu.memref_slice %arg5[%c6_i32_65, %c0_i32_66] : memref<8x128xf32, #tpu.memory_space<vmem>> -> memref<1x128xf32, #tpu.memory_space<vmem>>
    %83 = tpu.memref_slice %arg6[%c6_i32_62] : memref<8x!tpu.dma_semaphore, #tpu.memory_space<semaphore_mem>> -> memref<1x!tpu.dma_semaphore, #tpu.memory_space<semaphore_mem>>
    %84 = tpu.memref_squeeze %83 : memref<1x!tpu.dma_semaphore, #tpu.memory_space<semaphore_mem>> -> memref<!tpu.dma_semaphore, #tpu.memory_space<semaphore_mem>>
    tpu.wait_dma2 semaphore(%84 : memref<!tpu.dma_semaphore, #tpu.memory_space<semaphore_mem>>) src(%81 : memref<1x128xf32, #tpu.memory_space<any>>) dst(%82 : memref<1x128xf32, #tpu.memory_space<vmem>>)
    %c7_i32_67 = arith.constant 7 : i32
    %c0_i32_68 = arith.constant 0 : i32
    %c0_i32_69 = arith.constant 0 : i32
    %85 = tpu.memref_slice %arg2[%c0_i32_68, %c0_i32_69] : memref<64x128xf32, #tpu.memory_space<any>> -> memref<1x128xf32, #tpu.memory_space<any>>
    %c7_i32_70 = arith.constant 7 : i32
    %c0_i32_71 = arith.constant 0 : i32
    %86 = tpu.memref_slice %arg5[%c7_i32_70, %c0_i32_71] : memref<8x128xf32, #tpu.memory_space<vmem>> -> memref<1x128xf32, #tpu.memory_space<vmem>>
    %87 = tpu.memref_slice %arg6[%c7_i32_67] : memref<8x!tpu.dma_semaphore, #tpu.memory_space<semaphore_mem>> -> memref<1x!tpu.dma_semaphore, #tpu.memory_space<semaphore_mem>>
    %88 = tpu.memref_squeeze %87 : memref<1x!tpu.dma_semaphore, #tpu.memory_space<semaphore_mem>> -> memref<!tpu.dma_semaphore, #tpu.memory_space<semaphore_mem>>
    tpu.wait_dma2 semaphore(%88 : memref<!tpu.dma_semaphore, #tpu.memory_space<semaphore_mem>>) src(%85 : memref<1x128xf32, #tpu.memory_space<any>>) dst(%86 : memref<1x128xf32, #tpu.memory_space<vmem>>)
    %c0 = arith.constant 0 : index
    %c0_72 = arith.constant 0 : index
    %89 = vector.load %arg5[%c0, %c0_72] : memref<8x128xf32, #tpu.memory_space<vmem>>, vector<8x128xf32>
    %c0_73 = arith.constant 0 : index
    %c0_74 = arith.constant 0 : index
    %90 = vector.load %arg3[%c0_73, %c0_74] : memref<128x128xf32, #tpu.memory_space<vmem>>, vector<128x128xf32>
    %cst = arith.constant dense<0.000000e+00> : vector<8x128xf32>
    %91 = tpu.matmul %89, %90, %cst {dimension_numbers = #tpu.dot_dimension_numbers<[1], [1], [0], [0], [0, 0, 1, 0], [], []>} : vector<8x128xf32>, vector<128x128xf32>, vector<8x128xf32> -> vector<8x128xf32>
    %c0_75 = arith.constant 0 : index
    %c0_76 = arith.constant 0 : index
    %92 = vector.load %arg4[%c0_75, %c0_76] : memref<8x128xf32, #tpu.memory_space<vmem>>, vector<8x128xf32>
    tpu.vector_store %arg4[%c0_75, %c0_76], %91 {strides = array<i32>} : memref<8x128xf32, #tpu.memory_space<vmem>>, vector<8x128xf32>,
    return
  }
  func.func @transform_1(%arg0: i32, %arg1: memref<16xi32, #tpu.memory_space<smem>>) -> (i32, i32) {
    %c0_i32 = arith.constant 0 : i32
    %c0_i32_0 = arith.constant 0 : i32
    %c0_i32_1 = arith.constant 0 : i32
    return %c0_i32, %c0_i32_0 : i32, i32
  }
  func.func @transform_2(%arg0: i32, %arg1: memref<16xi32, #tpu.memory_space<smem>>) -> (i32, i32) {
    %c0_i32 = arith.constant 0 : i32
    %c0_i32_0 = arith.constant 0 : i32
    return %arg0, %c0_i32 : i32, i32
  }
}

</mosaic_0001>

<llo_original>
// kernel: tpu_custom_call.1
$region0: #{tpu_custom_call.1}
  #allocation0 [shape = 'u32[]', space=smem, size = 0x4, offset = 0x4, fixed_abs, tag = 'smem constant byte address 0x4 - core index']
  #allocation1 [shape = 'u32[144,128]{1,0:T(1,128)}', space=vmem, size = 0x12000, scoped, tag = 'internal scratch']
  #allocation2 [shape = 'f32[8,128]{1,0:T(8,128)}', space=vmem, size = 0x1000, scoped, tag = 'scratch operand']
  #allocation3 [shape = 's32[8]{0}', space=sflag, size = 0x20, scoped, tag = 'scratch operand']
  #allocation4 [shape = 's32[1]{0}', space=sflag, size = 0x4, scoped, tag = 'scoped memory for tpu_custom_call.1']
  #allocation5 [shape = 'u8[512]{0}', space=smem, size = 0x200, scoped, tag = 'prefetched SMEM operand 0']
  #allocation10 [shape = 's32[]', space=sflag, size = 0x4, offset = 0, fixed_abs, tag = 'sflag constant byte address 0x0 - dummy sync flag']
  #allocation11 [shape = 's32[]', space=sflag, size = 0x4, offset = 0, fixed_abs, tag = 'sflag constant byte address 0x0 - dummy sync flag']
  #allocation12 [shape = 'u32[]', space=smem, size = 0x4, offset = 0x44, fixed_abs, tag = 'smem constant byte address 0x44 - assertion arg 0']
  #allocation13 [shape = 'u32[]', space=smem, size = 0x4, offset = 0x48, fixed_abs, tag = 'smem constant byte address 0x48 - assertion arg 1']
  #allocation14 [shape = 's32[]', space=sflag, size = 0x4, offset = 0, fixed_abs, tag = 'sflag constant byte address 0x0 - dummy sync flag']
  #allocation15 [shape = 's32[]', space=sflag, size = 0x4, offset = 0, fixed_abs, tag = 'sflag constant byte address 0x0 - dummy sync flag']
  #allocation16 [shape = 's32[]', space=sflag, size = 0x4, offset = 0, fixed_abs, tag = 'sflag constant byte address 0x0 - dummy sync flag']
  #allocation17 [shape = 's32[]', space=sflag, size = 0x4, offset = 0, fixed_abs, tag = 'sflag constant byte address 0x0 - dummy sync flag']
  #allocation18 [shape = 's32[]', space=sflag, size = 0x4, offset = 0, fixed_abs, tag = 'sflag constant byte address 0x0 - dummy sync flag']
  #allocation19 [shape = 's32[]', space=sflag, size = 0x4, offset = 0, fixed_abs, tag = 'sflag constant byte address 0x0 - dummy sync flag']
  #allocation20 [shape = 's32[]', space=sflag, size = 0x4, offset = 0, fixed_abs, tag = 'sflag constant byte address 0x0 - dummy sync flag']
  #allocation21 [shape = 's32[]', space=sflag, size = 0x4, offset = 0, fixed_abs, tag = 'sflag constant byte address 0x0 - dummy sync flag']
  #allocation22 [shape = 's32[]', space=sflag, size = 0x4, offset = 0, fixed_abs, tag = 'sflag constant byte address 0x0 - dummy sync flag']
  #allocation23 [shape = 's32[]', space=sflag, size = 0x4, offset = 0, fixed_abs, tag = 'sflag constant byte address 0x0 - dummy sync flag']
  #allocation24 [shape = 's32[]', space=sflag, size = 0x4, offset = 0, fixed_abs, tag = 'sflag constant byte address 0x0 - dummy sync flag']
  #allocation25 [shape = 's32[]', space=sflag, size = 0x4, offset = 0, fixed_abs, tag = 'sflag constant byte address 0x0 - dummy sync flag']
  #allocation26 [shape = 's32[]', space=sflag, size = 0x4, offset = 0, fixed_abs, tag = 'sflag constant byte address 0x0 - dummy sync flag']
  #allocation27 [shape = 's32[]', space=sflag, size = 0x4, offset = 0, fixed_abs, tag = 'sflag constant byte address 0x0 - dummy sync flag']
  %s0 = inlined_call_operand.hbm [shape: s32[16], index: 0, kind: input, shape index: {}]
  %s1 = inlined_call_operand.hbm [shape: f32[64,128], index: 1, kind: input, shape index: {}]
  %s2 = inlined_call_operand.hbm [shape: f32[128,128], index: 2, kind: input, shape index: {}]
  %s3 = inlined_call_operand.hbm [shape: f32[16,128], index: 3, kind: output, shape index: {}]
  %s4 = sld [smem:[#allocation0]]
  $region73: #{tpu_custom_call.1} parent=0
    _
  %s6 = ssub.s32 1, %s4
  %s7 = scalar_select 0, %s6, %s4
  %9 = dma.hbm_to_smem %s0, 16, [#allocation5], [#allocation4]
  %10 = dma.done [#allocation4], 16
  %11 = sfence
  $region1: #{tpu_custom_call.1} parent=0
    #allocation6 [shape = 'u8[65536]{0}', space=vmem, size = 0x10000, scoped, tag = 'input window, operand 2, single buffered']
    #allocation7 [shape = 's32[2]{0}', space=sflag, size = 0x8, scoped, tag = 'scoped memory for tpu_custom_call.1']
    #allocation8 [shape = 's32[2]{0}', space=sflag, size = 0x8, scoped, tag = 'scoped memory for tpu_custom_call.1']
    #allocation9 [shape = 'u8[8192]{0}', space=vmem, size = 0x2000, scoped, tag = 'output window, operand 0']
    %12 = vsyncpa [#allocation7], 0
    %13 = vsyncpa [#allocation8], 0
    %s14 = scalar_lea.sflag [#allocation8], 1
    %15 = vsyncpa %s14, 0
    loop: start=0, step=1, limit=4
    $region2: #{tpu_custom_call.1} parent=1 // loop_pre_header
      _
    $region3: #{tpu_custom_call.1} parent=1 // loop_header
      %s17 = sphi 0, %s21
      %p18 = scmp.ge.s32.totalorder %s17, 4
      %s25 = sphi 0, %s25
      %s27 = sphi 0, %s25
      %s28 = sphi 0, %s27
      %s42 = sphi 0, %s28
      %s48 = sphi 0, %s50
      %s51 = sphi 0, %s48
      %s52 = sphi 0, %s51
      %s68 = sphi 0, %s52
    $region4: #{tpu_custom_call.1} parent=1 // loop_header_branch
      %20 = sbr.rel (%p18) target = $region8
    $region5: #{tpu_custom_call.1} parent=1 // loop_body
      %s22 = ssub.s32 %s17, 1
      %s23 = ssub.s32 %s17, 2
      %s24 = sadd.s32 %s17, 1
      %s26 = sadd.s32 %s25, 1
      %p29 = scmp.eq.s32.totalorder %s17, 1
      %p30 = scmp.ne.s32.totalorder %s25, %s27
      %p31 = scmp.eq.s32.totalorder %s17, 0
      %p32 = por %p30, %p31
      %p33 = scmp.ne.s32.totalorder %s25, %s27
      %p34 = scmp.eq.s32.totalorder %s22, 1
      %p35 = por %p33, %p34
      %p36 = scmp.ne.s32.totalorder %s27, %s28
      %p37 = scmp.eq.s32.totalorder %s22, 0
      %p38 = por %p36, %p37
      %p39 = scmp.ne.s32.totalorder %s27, %s28
      %p40 = scmp.eq.s32.totalorder %s23, 1
      %p41 = por %p39, %p40
      %p43 = scmp.ne.s32.totalorder %s28, %s42
      %p44 = scmp.eq.s32.totalorder %s23, 0
      %p45 = por %p43, %p44
      %s46 = ssub.s32 %s17, %s24
      %p47 = scmp.eq.s32.totalorder %s46, 0
      %s49 = sadd.s32 %s48, 1
      %s50 = scalar_select %p47, %s48, %s49
      %p53 = pneg %p47
      %p54 = scmp.eq.s32.totalorder %s17, 1
      %p55 = por %p53, %p54
      %p56 = scmp.ne.s32.totalorder %s48, %s51
      %p57 = scmp.eq.s32.totalorder %s17, 0
      %p58 = por %p56, %p57
      %p59 = scmp.ne.s32.totalorder %s48, %s51
      %p60 = scmp.eq.s32.totalorder %s22, 1
      %p61 = por %p59, %p60
      %p62 = scmp.ne.s32.totalorder %s51, %s52
      %p63 = scmp.eq.s32.totalorder %s22, 0
      %p64 = por %p62, %p63
      %p65 = scmp.ne.s32.totalorder %s51, %s52
      %p66 = scmp.eq.s32.totalorder %s23, 1
      %p67 = por %p65, %p66
      %p69 = scmp.ne.s32.totalorder %s52, %s68
      %p70 = scmp.eq.s32.totalorder %s23, 0
      %p71 = por %p69, %p70
      %p72 = scmp.le.s32.totalorder 1, %s17
      %p73 = scmp.lt.s32.totalorder %s17, 3
      %p74 = pnand %p72, %p73
      %p75 = pneg %p74
      // Predicated region
      $region9: #{tpu_custom_call.1} parent=5 // pred_check
        _
      $region10: #{tpu_custom_call.1} parent=5 // pred_check_branch
        %77 = sbr.rel (%p74) target = $region12
      $region11: #{tpu_custom_call.1} parent=5 // pred_region
        %s78 = ssub.s32 %s17, 1
        // Predicated region
        $region13: #{tpu_custom_call.1} parent=11 // pred_check
          %p79 = pneg %p38
        $region14: #{tpu_custom_call.1} parent=11 // pred_check_branch
          %81 = sbr.rel (%p79) target = $region16
        $region15: #{tpu_custom_call.1} parent=11 // pred_region
          %s83 = ssub.s32 2048, 2048
          %84 = vsyncadd [#allocation7], %s83
          %s85 = sshll.u32 [#allocation6], 4
          %s86 = int_to_ptr.vmem [resolvable:$true] %s85
          %91 = dma.hbm_to_vmem [thread:$0]  %s2, 2048, %s86, [#allocation7], 128, 128, 8
        $region16: #{tpu_custom_call.1} parent=11 // pred_fallthru
          _
      $region12: #{tpu_custom_call.1} parent=5 // pred_fallthru
        _
      %p92 = scmp.lt.s32.totalorder %s17, 2
      // Predicated region
      $region17: #{tpu_custom_call.1} parent=5 // pred_check
        %p93 = pneg %p92
      $region18: #{tpu_custom_call.1} parent=5 // pred_check_branch
        %95 = sbr.rel (%p93) target = $region20
      $region19: #{tpu_custom_call.1} parent=5 // pred_region
        _
      $region20: #{tpu_custom_call.1} parent=5 // pred_fallthru
        _
      %p96 = scmp.le.s32.totalorder 1, %s17
      %p97 = scmp.lt.s32.totalorder %s17, 3
      %p98 = pnand %p96, %p97
      %p99 = pneg %p98
      // Predicated region
      $region21: #{tpu_custom_call.1} parent=5 // pred_check
        _
      $region22: #{tpu_custom_call.1} parent=5 // pred_check_branch
        %101 = sbr.rel (%p98) target = $region24
      $region23: #{tpu_custom_call.1} parent=5 // pred_region
        %s102 = ssub.s32 %s17, 1
        // Predicated region
        $region25: #{tpu_custom_call.1} parent=23 // pred_check
          %p103 = pneg %p38
        $region26: #{tpu_custom_call.1} parent=23 // pred_check_branch
          %105 = sbr.rel (%p103) target = $region28
        $region27: #{tpu_custom_call.1} parent=23 // pred_region
          %106 = dma.done [#allocation7], 2048
        $region28: #{tpu_custom_call.1} parent=23 // pred_fallthru
          _
        %p107 = pneg %p38
        %p108 = pneg %p35
        %p109 = pneg %p64
        %p110 = pneg %p61
        %s111 = sand.u32 %s51, 1
        %s112 = scalar_lea.sflag [#allocation8], %s111
        %s113 = sand.u32 %s51, 1
        %s114 = smul.addr %s113, 8
        %s115 = scalar_lea.vmem [#allocation9], %s114
        %s116 = smul.u32 %s22, 8
        %s117 = sld [smem:[#allocation5 + %s116]]
        %s118 = smul.addr %s117, 16
        %s119 = scalar_lea.hbm %s1, %s118
        // Predicated region
        $region29: #{tpu_custom_call.1} parent=23 // pred_check
          _
        $region30: #{tpu_custom_call.1} parent=23 // pred_check_branch
          %121 = sbr.rel target = $region32
        $region31: #{tpu_custom_call.1} parent=23 // pred_region
          %122 = sst [smem:[#allocation12]] [#allocation11]
          %123 = sst [smem:[#allocation13]] [#allocation10]
        $region32: #{tpu_custom_call.1} parent=23 // pred_fallthru
          _
        %125 = shalt.err (0)
        %s127 = sshll.u32 [#allocation2], 4
        %s128 = int_to_ptr.vmem [resolvable:$true] %s127
        %130 = dma.hbm_to_vmem [thread:$0]  %s119, 16, %s128, [#allocation3]
        %s131 = sadd.s32 %s116, 1
        %s132 = sld [smem:[#allocation5 + %s131]]
        %s133 = smul.addr %s132, 16
        %s134 = scalar_lea.hbm %s1, %s133
        %s135 = scalar_lea.vmem [#allocation2], 1
        %s136 = scalar_lea.sflag [#allocation3], 1
        // Predicated region
        $region33: #{tpu_custom_call.1} parent=23 // pred_check
          _
        $region34: #{tpu_custom_call.1} parent=23 // pred_check_branch
          %138 = sbr.rel target = $region36
        $region35: #{tpu_custom_call.1} parent=23 // pred_region
          %139 = sst [smem:[#allocation12]] [#allocation15]
          %140 = sst [smem:[#allocation13]] [#allocation14]
        $region36: #{tpu_custom_call.1} parent=23 // pred_fallthru
          _
        %142 = shalt.err (0)
        %s144 = sshll.u32 %s135, 4
        %s145 = int_to_ptr.vmem [resolvable:$true] %s144
        %147 = dma.hbm_to_vmem [thread:$0]  %s134, 16, %s145, %s136
        %s148 = sadd.s32 %s116, 2
        %s149 = sld [smem:[#allocation5 + %s148]]
        %s150 = smul.addr %s149, 16
        %s151 = scalar_lea.hbm %s1, %s150
        %s152 = scalar_lea.vmem [#allocation2], 2
        %s153 = scalar_lea.sflag [#allocation3], 2
        // Predicated region
        $region37: #{tpu_custom_call.1} parent=23 // pred_check
          _
        $region38: #{tpu_custom_call.1} parent=23 // pred_check_branch
          %155 = sbr.rel target = $region40
        $region39: #{tpu_custom_call.1} parent=23 // pred_region
          %156 = sst [smem:[#allocation12]] [#allocation17]
          %157 = sst [smem:[#allocation13]] [#allocation16]
        $region40: #{tpu_custom_call.1} parent=23 // pred_fallthru
          _
        %159 = shalt.err (0)
        %s161 = sshll.u32 %s152, 4
        %s162 = int_to_ptr.vmem [resolvable:$true] %s161
        %164 = dma.hbm_to_vmem [thread:$0]  %s151, 16, %s162, %s153
        %s165 = sadd.s32 %s116, 3
        %s166 = sld [smem:[#allocation5 + %s165]]
        %s167 = smul.addr %s166, 16
        %s168 = scalar_lea.hbm %s1, %s167
        %s169 = scalar_lea.vmem [#allocation2], 3
        %s170 = scalar_lea.sflag [#allocation3], 3
        // Predicated region
        $region41: #{tpu_custom_call.1} parent=23 // pred_check
          _
        $region42: #{tpu_custom_call.1} parent=23 // pred_check_branch
          %172 = sbr.rel target = $region44
        $region43: #{tpu_custom_call.1} parent=23 // pred_region
          %173 = sst [smem:[#allocation12]] [#allocation19]
          %174 = sst [smem:[#allocation13]] [#allocation18]
        $region44: #{tpu_custom_call.1} parent=23 // pred_fallthru
          _
        %176 = shalt.err (0)
        %s178 = sshll.u32 %s169, 4
        %s179 = int_to_ptr.vmem [resolvable:$true] %s178
        %181 = dma.hbm_to_vmem [thread:$0]  %s168, 16, %s179, %s170
        %s182 = sadd.s32 %s116, 4
        %s183 = sld [smem:[#allocation5 + %s182]]
        %s184 = smul.addr %s183, 16
        %s185 = scalar_lea.hbm %s1, %s184
        %s186 = scalar_lea.vmem [#allocation2], 4
        %s187 = scalar_lea.sflag [#allocation3], 4
        // Predicated region
        $region45: #{tpu_custom_call.1} parent=23 // pred_check
          _
        $region46: #{tpu_custom_call.1} parent=23 // pred_check_branch
          %189 = sbr.rel target = $region48
        $region47: #{tpu_custom_call.1} parent=23 // pred_region
          %190 = sst [smem:[#allocation12]] [#allocation21]
          %191 = sst [smem:[#allocation13]] [#allocation20]
        $region48: #{tpu_custom_call.1} parent=23 // pred_fallthru
          _
        %193 = shalt.err (0)
        %s195 = sshll.u32 %s186, 4
        %s196 = int_to_ptr.vmem [resolvable:$true] %s195
        %198 = dma.hbm_to_vmem [thread:$0]  %s185, 16, %s196, %s187
        %s199 = sadd.s32 %s116, 5
        %s200 = sld [smem:[#allocation5 + %s199]]
        %s201 = smul.addr %s200, 16
        %s202 = scalar_lea.hbm %s1, %s201
        %s203 = scalar_lea.vmem [#allocation2], 5
        %s204 = scalar_lea.sflag [#allocation3], 5
        // Predicated region
        $region49: #{tpu_custom_call.1} parent=23 // pred_check
          _
        $region50: #{tpu_custom_call.1} parent=23 // pred_check_branch
          %206 = sbr.rel target = $region52
        $region51: #{tpu_custom_call.1} parent=23 // pred_region
          %207 = sst [smem:[#allocation12]] [#allocation23]
          %208 = sst [smem:[#allocation13]] [#allocation22]
        $region52: #{tpu_custom_call.1} parent=23 // pred_fallthru
          _
        %210 = shalt.err (0)
        %s212 = sshll.u32 %s203, 4
        %s213 = int_to_ptr.vmem [resolvable:$true] %s212
        %215 = dma.hbm_to_vmem [thread:$0]  %s202, 16, %s213, %s204
        %s216 = sadd.s32 %s116, 6
        %s217 = sld [smem:[#allocation5 + %s216]]
        %s218 = smul.addr %s217, 16
        %s219 = scalar_lea.hbm %s1, %s218
        %s220 = scalar_lea.vmem [#allocation2], 6
        %s221 = scalar_lea.sflag [#allocation3], 6
        // Predicated region
        $region53: #{tpu_custom_call.1} parent=23 // pred_check
          _
        $region54: #{tpu_custom_call.1} parent=23 // pred_check_branch
          %223 = sbr.rel target = $region56
        $region55: #{tpu_custom_call.1} parent=23 // pred_region
          %224 = sst [smem:[#allocation12]] [#allocation25]
          %225 = sst [smem:[#allocation13]] [#allocation24]
        $region56: #{tpu_custom_call.1} parent=23 // pred_fallthru
          _
        %227 = shalt.err (0)
        %s229 = sshll.u32 %s220, 4
        %s230 = int_to_ptr.vmem [resolvable:$true] %s229
        %232 = dma.hbm_to_vmem [thread:$0]  %s219, 16, %s230, %s221
        %s233 = sadd.s32 %s116, 7
        %s234 = sld [smem:[#allocation5 + %s233]]
        %s235 = smul.addr %s234, 16
        %s236 = scalar_lea.hbm %s1, %s235
        %s237 = scalar_lea.vmem [#allocation2], 7
        %s238 = scalar_lea.sflag [#allocation3], 7
        // Predicated region
        $region57: #{tpu_custom_call.1} parent=23 // pred_check
          _
        $region58: #{tpu_custom_call.1} parent=23 // pred_check_branch
          %240 = sbr.rel target = $region60
        $region59: #{tpu_custom_call.1} parent=23 // pred_region
          %241 = sst [smem:[#allocation12]] [#allocation27]
          %242 = sst [smem:[#allocation13]] [#allocation26]
        $region60: #{tpu_custom_call.1} parent=23 // pred_fallthru
          _
        %244 = shalt.err (0)
        %s246 = sshll.u32 %s237, 4
        %s247 = int_to_ptr.vmem [resolvable:$true] %s246
        %249 = dma.hbm_to_vmem [thread:$0]  %s236, 16, %s247, %s238
        %s250 = smul.u32 1, 1
        %s251 = sshll.u32 %s250, 4
        %252 = dma.done [#allocation3], %s251
        %s253 = sshll.u32 %s250, 4
        %254 = dma.done %s136, %s253
        %s255 = sshll.u32 %s250, 4
        %256 = dma.done %s153, %s255
        %s257 = sshll.u32 %s250, 4
        %258 = dma.done %s170, %s257
        %s259 = sshll.u32 %s250, 4
        %260 = dma.done %s187, %s259
        %s261 = sshll.u32 %s250, 4
        %262 = dma.done %s204, %s261
        %s263 = sshll.u32 %s250, 4
        %264 = dma.done %s221, %s263
        %s265 = sshll.u32 %s250, 4
        %266 = dma.done %s238, %s265
        %v267 = vld [vmem:[#allocation2] sm:$0xff]
        %v268 = vld [vmem:[#allocation6] sm:$0xff]
        %v269 = vld [vmem:[#allocation6 + $0x8] sm:$0xff]
        %v270 = vld [vmem:[#allocation6 + $0x10] sm:$0xff]
        %v271 = vld [vmem:[#allocation6 + $0x18] sm:$0xff]
        %v272 = vld [vmem:[#allocation6 + $0x20] sm:$0xff]
        %v273 = vld [vmem:[#allocation6 + $0x28] sm:$0xff]
        %v274 = vld [vmem:[#allocation6 + $0x30] sm:$0xff]
        %v275 = vld [vmem:[#allocation6 + $0x38] sm:$0xff]
        %v276 = vld [vmem:[#allocation6 + $0x40] sm:$0xff]
        %v277 = vld [vmem:[#allocation6 + $0x48] sm:$0xff]
        %v278 = vld [vmem:[#allocation6 + $0x50] sm:$0xff]
        %v279 = vld [vmem:[#allocation6 + $0x58] sm:$0xff]
        %v280 = vld [vmem:[#allocation6 + $0x60] sm:$0xff]
        %v281 = vld [vmem:[#allocation6 + $0x68] sm:$0xff]
        %v282 = vld [vmem:[#allocation6 + $0x70] sm:$0xff]
        %v283 = vld [vmem:[#allocation6 + $0x78] sm:$0xff]
        %284 = vmatprep.subr.mxu0 0.0
        %285 = vmatpush1.xpose.msra.mxu0 %v268
        %286 = vmatprep.subr.mxu0 0.0
        %287 = vmatpush1.xpose.msra.mxu0 %v269
        %288 = vmatprep.subr.mxu0 0.0
        %289 = vmatpush1.xpose.msra.mxu0 %v270
        %290 = vmatprep.subr.mxu0 0.0
        %291 = vmatpush1.xpose.msra.mxu0 %v271
        %292 = vmatprep.subr.mxu0 0.0
        %293 = vmatpush1.xpose.msra.mxu0 %v272
        %294 = vmatprep.subr.mxu0 0.0
        %295 = vmatpush1.xpose.msra.mxu0 %v273
        %296 = vmatprep.subr.mxu0 0.0
        %297 = vmatpush1.xpose.msra.mxu0 %v274
        %298 = vmatprep.subr.mxu0 0.0
        %299 = vmatpush1.xpose.msra.mxu0 %v275
        %300 = vmatprep.subr.mxu0 0.0
        %301 = vmatpush1.xpose.msra.mxu0 %v276
        %302 = vmatprep.subr.mxu0 0.0
        %303 = vmatpush1.xpose.msra.mxu0 %v277
        %304 = vmatprep.subr.mxu0 0.0
        %305 = vmatpush1.xpose.msra.mxu0 %v278
        %306 = vmatprep.subr.mxu0 0.0
        %307 = vmatpush1.xpose.msra.mxu0 %v279
        %308 = vmatprep.subr.mxu0 0.0
        %309 = vmatpush1.xpose.msra.mxu0 %v280
        %310 = vmatprep.subr.mxu0 0.0
        %311 = vmatpush1.xpose.msra.mxu0 %v281
        %312 = vmatprep.subr.mxu0 0.0
        %313 = vmatpush1.xpose.msra.mxu0 %v282
        %314 = vmatprep.subr.mxu0 0.0
        %315 = vmatpush1.xpose.msra.mxu0 %v283
        %316 = vmatprep.subr.mxu0 0.0
        %317 = vmatpush1.xpose.msra.mxu0 0.0
        %318 = vmatprep.subr.mxu0 0.0
        %319 = vmatpush1.xpose.msra.mxu0 0.0
        %320 = vmatprep.subr.mxu0 0.0
        %321 = vmatpush1.xpose.msra.mxu0 0.0
        %322 = vmatprep.subr.mxu0 0.0
        %323 = vmatpush1.xpose.msra.mxu0 0.0
        %324 = vmatprep.subr.mxu0 0.0
        %325 = vmatpush1.xpose.msra.mxu0 0.0
        %326 = vmatprep.subr.mxu0 0.0
        %327 = vmatpush1.xpose.msra.mxu0 0.0
        %328 = vmatprep.subr.mxu0 0.0
        %329 = vmatpush1.xpose.msra.mxu0 0.0
        %330 = vmatprep.subr.mxu0 0.0
        %331 = vmatpush1.xpose.msra.mxu0 0.0
        %332 = vmatprep.subr.mxu0 0.0
        %333 = vmatpush1.xpose.msra.mxu0 0.0
        %334 = vmatprep.subr.mxu0 0.0
        %335 = vmatpush1.xpose.msra.mxu0 0.0
        %336 = vmatprep.subr.mxu0 0.0
        %337 = vmatpush1.xpose.msra.mxu0 0.0
        %338 = vmatprep.subr.mxu0 0.0
        %339 = vmatpush1.xpose.msra.mxu0 0.0
        %340 = vmatprep.subr.mxu0 0.0
        %341 = vmatpush1.xpose.msra.mxu0 0.0
        %342 = vmatprep.subr.mxu0 0.0
        %343 = vmatpush1.xpose.msra.mxu0 0.0
        %344 = vmatprep.subr.mxu0 0.0
        %345 = vmatpush1.xpose.msra.mxu0 0.0
        %346 = vmatprep.subr.mxu0 0.0
        %347 = vmatpush1.xpose.msra.mxu0 0.0
        %348 = vmatprep.mubr.f32.mxu0 0.0
        %349 = vmatmul.mubr.f32.gmra.mrb[0].mxu0 %v267
        %v350 = vpop.f32.mrb[0].mxu0
        %v351 = vadd.f32 0.0, %v350
        %v352 = vpop.f32.mrb[0].mxu0
        %353 = vdwg.mxu0
        %354 = vst [vmem:[%s115] sm:$0xff] %v351
        %s355 = sand.u32 %s51, 1
        %s356 = scalar_lea.sflag [#allocation8], %s355
        %s357 = sand.u32 %s51, 1
        %s358 = smul.addr %s357, 8
        %s359 = scalar_lea.vmem [#allocation9], %s358
        // Predicated region
        $region61: #{tpu_custom_call.1} parent=23 // pred_check
          %p360 = pneg %p61
        $region62: #{tpu_custom_call.1} parent=23 // pred_check_branch
          %362 = sbr.rel (%p360) target = $region64
        $region63: #{tpu_custom_call.1} parent=23 // pred_region
          %s364 = ssub.s32 128, 128
          %365 = vsyncadd %s356, %s364
          %s366 = smul.addr %s22, 128
          %s367 = scalar_lea.hbm %s3, %s366
          %s369 = sshll.u32 %s359, 4
          %s370 = int_to_ptr.vmem [resolvable:$true] %s369
          %372 = dma.vmem_to_hbm [thread:$0]  %s370, 128, %s367, %s356
        $region64: #{tpu_custom_call.1} parent=23 // pred_fallthru
          _
      $region24: #{tpu_custom_call.1} parent=5 // pred_fallthru
        _
      %p373 = scmp.le.s32.totalorder 2, %s17
      // Predicated region
      $region65: #{tpu_custom_call.1} parent=5 // pred_check
        %p374 = pneg %p373
      $region66: #{tpu_custom_call.1} parent=5 // pred_check_branch
        %376 = sbr.rel (%p374) target = $region68
      $region67: #{tpu_custom_call.1} parent=5 // pred_region
        %s377 = ssub.s32 %s17, 2
        // Predicated region
        $region69: #{tpu_custom_call.1} parent=67 // pred_check
          %p378 = pneg %p67
        $region70: #{tpu_custom_call.1} parent=67 // pred_check_branch
          %380 = sbr.rel (%p378) target = $region72
        $region71: #{tpu_custom_call.1} parent=67 // pred_region
          %s381 = sand.u32 %s52, 1
          %s382 = scalar_lea.sflag [#allocation8], %s381
          %s383 = sand.u32 %s52, 1
          %s384 = smul.addr %s383, 8
          %s385 = scalar_lea.vmem [#allocation9], %s384
          %386 = dma.done %s382, 128
        $region72: #{tpu_custom_call.1} parent=67 // pred_fallthru
          _
      $region68: #{tpu_custom_call.1} parent=5 // pred_fallthru
        _
    $region6: #{tpu_custom_call.1} parent=1 // loop_footer
      %s21 = sadd.s32 1, %s17
    $region7: #{tpu_custom_call.1} parent=1 // loop_footer_branch
      %16 = sbr.rel target = $region3
    $region8: #{tpu_custom_call.1} parent=1 // loop_exit
      _
    %387 = vsyncpa [#allocation7], 1
    %s388 = scalar_lea.sflag [#allocation7], 1
    %389 = vsyncpa %s388, 1
    %390 = vsyncpa [#allocation8], 1
    %s391 = scalar_lea.sflag [#allocation8], 1
    %392 = vsyncpa %s391, 1
  %393 = vsyncmov [#allocation3]
  %s394 = vpop.sfrf %393
  %p395 = scmp.eq.s32.totalorder %s394, 0
  %p396 = pneg %p395
  %398 = shalt.err (%p396)
  %s399 = scalar_lea.sflag [#allocation3], 1
  %400 = vsyncmov %s399
  %s401 = vpop.sfrf %400
  %p402 = scmp.eq.s32.totalorder %s401, 0
  %p403 = pneg %p402
  %405 = shalt.err (%p403)
  %s406 = scalar_lea.sflag [#allocation3], 2
  %407 = vsyncmov %s406
  %s408 = vpop.sfrf %407
  %p409 = scmp.eq.s32.totalorder %s408, 0
  %p410 = pneg %p409
  %412 = shalt.err (%p410)
  %s413 = scalar_lea.sflag [#allocation3], 3
  %414 = vsyncmov %s413
  %s415 = vpop.sfrf %414
  %p416 = scmp.eq.s32.totalorder %s415, 0
  %p417 = pneg %p416
  %419 = shalt.err (%p417)
  %s420 = scalar_lea.sflag [#allocation3], 4
  %421 = vsyncmov %s420
  %s422 = vpop.sfrf %421
  %p423 = scmp.eq.s32.totalorder %s422, 0
  %p424 = pneg %p423
  %426 = shalt.err (%p424)
  %s427 = scalar_lea.sflag [#allocation3], 5
  %428 = vsyncmov %s427
  %s429 = vpop.sfrf %428
  %p430 = scmp.eq.s32.totalorder %s429, 0
  %p431 = pneg %p430
  %433 = shalt.err (%p431)
  %s434 = scalar_lea.sflag [#allocation3], 6
  %435 = vsyncmov %s434
  %s436 = vpop.sfrf %435
  %p437 = scmp.eq.s32.totalorder %s436, 0
  %p438 = pneg %p437
  %440 = shalt.err (%p438)
  %s441 = scalar_lea.sflag [#allocation3], 7
  %442 = vsyncmov %s441
  %s443 = vpop.sfrf %442
  %p444 = scmp.eq.s32.totalorder %s443, 0
  %p445 = pneg %p444
  %447 = shalt.err (%p445)

</llo_original>
